<compile_context>
chip_gen: v5e
topology: v5e:2x2
jax: 0.10.0
libtpu: 0.0.40
codegen_flags: <defaults>
</compile_context>

<pallas_src>
import jax
import jax.numpy as jnp
from jax.experimental import pallas as pl
from jax.experimental.pallas import tpu as pltpu

TB_MAX = 512        # max batch rows per grid step (mem-bound: big tiles win)
NUM_CLASSES = 10
LANE = 128


def _round_up(n, m):
    return ((n + m - 1) // m) * m


def _classifier_kernel(x_ref, w01_ref, t1_ref, w2_ref, t2_ref, w3_ref, b3_ref,
                       out_ref):
    """Whole forward pass for one (TB, features) batch tile."""
    neg_slope = jnp.float32(0.01)  # nn.LeakyReLU default

    # x streamed in f32; cast to bf16 only in VMEM, right before the MXU.
    x = x_ref[...].astype(jnp.bfloat16)

    # --- encoder Linear folded into Linear(latent,256) + eval-BN (scale folded
    #     into the weight, bias+shift folded into t1) + LeakyReLU; Dropout = id.
    h = jnp.dot(x, w01_ref[...], preferred_element_type=jnp.float32)
    h = h + t1_ref[...]
    h = jnp.where(h > 0, h, neg_slope * h)

    # --- Linear(256,128) + eval-BN (folded) + LeakyReLU; Dropout = id ---
    h = jnp.dot(h.astype(jnp.bfloat16), w2_ref[...],
                preferred_element_type=jnp.float32)
    h = h + t2_ref[...]
    h = jnp.where(h > 0, h, neg_slope * h)

    # --- Linear(128, 10) (padded to 128 output lanes, bf16 writeback) ---
    out = jnp.dot(h.astype(jnp.bfloat16), w3_ref[...],
                  preferred_element_type=jnp.float32) + b3_ref[...]
    out_ref[...] = out.astype(out_ref.dtype)


def _const_spec(a):
    """Full-array operand, same block every grid step (stays VMEM-resident)."""
    return pl.BlockSpec(a.shape, lambda i: tuple(0 for _ in a.shape))


@jax.jit
def classifier_forward(x_flat, params):
    (w01, t1, w2, t2, w3, b3) = params
    B, D = x_flat.shape
    out_pad = w3.shape[1]

    # Adaptive batch tile: large for throughput, but (a) don't pad tiny batches
    # up to 512 rows and (b) keep >=2 grid steps when possible so the "parallel"
    # batch axis can be sharded across two TensorCores (v7x).
    if B >= 2 * TB_MAX:
        tb = TB_MAX
    else:
        tb = max(_round_up(pl.cdiv(B, 2), 8), 8)
    grid = pl.cdiv(B, tb)
    b_pad = grid * tb

    # Only pad the batch dim (f32, no dtype round-trip); no-op when divisible.
    x_in = x_flat if b_pad == B else jnp.pad(x_flat, ((0, b_pad - B), (0, 0)))

    weight_args = (w01, t1, w2, t2, w3, b3)
    out = pl.pallas_call(
        _classifier_kernel,
        out_shape=jax.ShapeDtypeStruct((b_pad, out_pad), jnp.bfloat16),
        grid=(grid,),
        in_specs=[pl.BlockSpec((tb, D), lambda i: (i, 0))]   # full feature dim
                 + [_const_spec(a) for a in weight_args],
        out_specs=pl.BlockSpec((tb, out_pad), lambda i: (i, 0)),
        compiler_params=pltpu.CompilerParams(
            dimension_semantics=("parallel",),       # shard batch tiles over TCs
            vmem_limit_bytes=48 * 1024 * 1024),      # > v5e 16MiB default, < v7x 64MiB
    )(x_in, *weight_args)

    # Garbage in padded rows / padded classes is sliced off here.
    return out[:B, :NUM_CLASSES].astype(jnp.float32)


def _linear_init(key, fan_in, fan_out):
    """PyTorch nn.Linear default init (kaiming_uniform_(a=sqrt(5))), stored (in, out)."""
    kw, kb = jax.random.split(key)
    bound = 1.0 / jnp.sqrt(jnp.float32(fan_in))   # == gain*sqrt(3/fan_in) for a=sqrt(5)
    w = jax.random.uniform(kw, (fan_in, fan_out), jnp.float32, -bound, bound)
    b = jax.random.uniform(kb, (1, fan_out), jnp.float32, -bound, bound)
    return w, b


def _bn_eval_scale_shift(num_features, eps=1e-5):
    """Fresh BatchNorm1d (gamma=1, beta=0, mean=0, var=1) in eval mode -> scale/shift."""
    gamma = jnp.ones((1, num_features), jnp.float32)
    beta = jnp.zeros((1, num_features), jnp.float32)
    running_mean = jnp.zeros((1, num_features), jnp.float32)
    running_var = jnp.ones((1, num_features), jnp.float32)
    scale = gamma / jnp.sqrt(running_var + eps)
    shift = beta - running_mean * scale
    return scale, shift


def init_params(key, input_dim, latent_dim, n_classes=NUM_CLASSES):
    """Build pre-folded kernel weights (folding done in f32, bf16 cast last)."""
    k_enc, k1, k2, k3 = jax.random.split(key, 4)
    out_pad = _round_up(n_classes, LANE)

    # Raw fp32 parameters, PyTorch-style init.
    ew, eb = _linear_init(k_enc, input_dim, latent_dim)   # synthetic encoder Linear
    w1, b1 = _linear_init(k1, latent_dim, 256)
    s1, t1 = _bn_eval_scale_shift(256)
    w2, b2 = _linear_init(k2, 256, 128)
    s2, t2 = _bn_eval_scale_shift(128)
    w3_r, b3_r = _linear_init(k3, 128, n_classes)

    # Fold affine constants (all in f32):
    #   layer1 pre-BN:  (x@ew + eb)@w1 + b1      = x@(ew@w1) + (eb@w1 + b1)
    #   eval BN:        z*s + t                  -> weight *= s, shift = bias*s + t
    w01 = (ew @ w1) * s1                      # (input_dim, 256)
    t1f = (eb @ w1 + b1) * s1 + t1            # (1, 256)
    w2s = w2 * s2                             # (256, 128)
    t2f = b2 * s2 + t2                        # (1, 128)

    # Zero-pad the 10-class head to 128 lanes (lane-dense, unmasked stores).
    w3 = jnp.zeros((128, out_pad), jnp.float32).at[:, :n_classes].set(w3_r)
    b3 = jnp.zeros((1, out_pad), jnp.float32).at[:, :n_classes].set(b3_r)

    # Matmul operands in bf16 (f32 MXU accumulation in-kernel); shifts stay f32.
    return (w01.astype(jnp.bfloat16), t1f,
            w2s.astype(jnp.bfloat16), t2f,
            w3.astype(jnp.bfloat16), b3)


if __name__ == "__main__":
    key = jax.random.PRNGKey(0)
    k_x, k_p = jax.random.split(key)

    # Small NCHW image batch, flattened exactly like getAcc does.
    N, C, H, W = 2, 4, 16, 16
    latent_dim = 32
    x = jax.random.normal(k_x, (N, C, H, W), jnp.float32)
    x_flat = x.reshape(N, -1)                      # (N, C*H*W) row-major

    params = init_params(k_p, C * H * W, latent_dim)

    logits = classifier_forward(x_flat, params)
    jax.block_until_ready(logits)
    assert logits.shape == (N, NUM_CLASSES) and logits.dtype == jnp.float32
    print("KERNEL_OK")
</pallas_src>

<mosaic_0001>
module attributes {stable_mosaic.version = 11 : i64} {
  func.func @_classifier_kernel(%arg0: i32, %arg1: memref<8x1024xf32, #tpu.memory_space<vmem>>, %arg2: memref<1024x256xbf16, #tpu.memory_space<vmem>>, %arg3: memref<1x256xf32, #tpu.memory_space<vmem>>, %arg4: memref<256x128xbf16, #tpu.memory_space<vmem>>, %arg5: memref<1x128xf32, #tpu.memory_space<vmem>>, %arg6: memref<128x128xbf16, #tpu.memory_space<vmem>>, %arg7: memref<1x128xf32, #tpu.memory_space<vmem>>, %arg8: memref<8x128xbf16, #tpu.memory_space<vmem>>) attributes {dimension_semantics = [#tpu.dimension_semantics<parallel>], iteration_bounds = array<i64: 1>, scalar_prefetch = 0 : i64, scratch_operands = 0 : i64, tpu.core_type = #tpu.core_type<tc>, window_params = [{transform_indices = @transform_0, window_bounds = array<i64: 8, 1024>}, {pipeline_mode = #tpu.pipeline_mode<synchronous>, transform_indices = @transform_1, window_bounds = array<i64: 1024, 256>}, {pipeline_mode = #tpu.pipeline_mode<synchronous>, transform_indices = @transform_2, window_bounds = array<i64: 1, 256>}, {pipeline_mode = #tpu.pipeline_mode<synchronous>, transform_indices = @transform_3, window_bounds = array<i64: 256, 128>}, {pipeline_mode = #tpu.pipeline_mode<synchronous>, transform_indices = @transform_4, window_bounds = array<i64: 1, 128>}, {pipeline_mode = #tpu.pipeline_mode<synchronous>, transform_indices = @transform_5, window_bounds = array<i64: 128, 128>}, {pipeline_mode = #tpu.pipeline_mode<synchronous>, transform_indices = @transform_6, window_bounds = array<i64: 1, 128>}, {transform_indices = @transform_7, window_bounds = array<i64: 8, 128>}]} {
    %c0 = arith.constant 0 : index
    %c0_0 = arith.constant 0 : index
    %0 = vector.load %arg1[%c0, %c0_0] : memref<8x1024xf32, #tpu.memory_space<vmem>>, vector<8x1024xf32>
    %1 = arith.truncf %0 : vector<8x1024xf32> to vector<8x1024xbf16>
    %c0_1 = arith.constant 0 : index
    %c0_2 = arith.constant 0 : index
    %2 = vector.load %arg2[%c0_1, %c0_2] : memref<1024x256xbf16, #tpu.memory_space<vmem>>, vector<1024x256xbf16>
    %cst = arith.constant dense<0.000000e+00> : vector<8x256xf32>
    %3 = tpu.matmul %1, %2, %cst {dimension_numbers = #tpu.dot_dimension_numbers<[1], [0], [0], [1], [0, 0, 1, 1], [], []>} : vector<8x1024xbf16>, vector<1024x256xbf16>, vector<8x256xf32> -> vector<8x256xf32>
    %c0_3 = arith.constant 0 : index
    %c0_4 = arith.constant 0 : index
    %4 = vector.load %arg3[%c0_3, %c0_4] : memref<1x256xf32, #tpu.memory_space<vmem>>, vector<1x256xf32>
    %5 = vector.broadcast %4 : vector<1x256xf32> to vector<8x256xf32>
    %6 = arith.addf %3, %5 : vector<8x256xf32>
    %cst_5 = arith.constant 0.000000e+00 : f32
    %7 = vector.broadcast %cst_5 : f32 to vector<8x256xf32>
    %8 = arith.cmpf ogt, %6, %7 : vector<8x256xf32>
    %cst_6 = arith.constant 0.00999999977 : f32
    %9 = vector.broadcast %cst_6 : f32 to vector<8x256xf32>
    %10 = arith.mulf %9, %6 : vector<8x256xf32>
    %11 = arith.select %8, %6, %10 : vector<8x256xi1>, vector<8x256xf32>
    %12 = arith.truncf %11 : vector<8x256xf32> to vector<8x256xbf16>
    %c0_7 = arith.constant 0 : index
    %c0_8 = arith.constant 0 : index
    %13 = vector.load %arg4[%c0_7, %c0_8] : memref<256x128xbf16, #tpu.memory_space<vmem>>, vector<256x128xbf16>
    %cst_9 = arith.constant dense<0.000000e+00> : vector<8x128xf32>
    %14 = tpu.matmul %12, %13, %cst_9 {dimension_numbers = #tpu.dot_dimension_numbers<[1], [0], [0], [1], [0, 0, 1, 1], [], []>} : vector<8x256xbf16>, vector<256x128xbf16>, vector<8x128xf32> -> vector<8x128xf32>
    %c0_10 = arith.constant 0 : index
    %c0_11 = arith.constant 0 : index
    %15 = vector.load %arg5[%c0_10, %c0_11] : memref<1x128xf32, #tpu.memory_space<vmem>>, vector<1x128xf32>
    %16 = vector.broadcast %15 : vector<1x128xf32> to vector<8x128xf32>
    %17 = arith.addf %14, %16 : vector<8x128xf32>
    %cst_12 = arith.constant 0.000000e+00 : f32
    %18 = vector.broadcast %cst_12 : f32 to vector<8x128xf32>
    %19 = arith.cmpf ogt, %17, %18 : vector<8x128xf32>
    %cst_13 = arith.constant 0.00999999977 : f32
    %20 = vector.broadcast %cst_13 : f32 to vector<8x128xf32>
    %21 = arith.mulf %20, %17 : vector<8x128xf32>
    %22 = arith.select %19, %17, %21 : vector<8x128xi1>, vector<8x128xf32>
    %23 = arith.truncf %22 : vector<8x128xf32> to vector<8x128xbf16>
    %c0_14 = arith.constant 0 : index
    %c0_15 = arith.constant 0 : index
    %24 = vector.load %arg6[%c0_14, %c0_15] : memref<128x128xbf16, #tpu.memory_space<vmem>>, vector<128x128xbf16>
    %cst_16 = arith.constant dense<0.000000e+00> : vector<8x128xf32>
    %25 = tpu.matmul %23, %24, %cst_16 {dimension_numbers = #tpu.dot_dimension_numbers<[1], [0], [0], [1], [0, 0, 1, 1], [], []>} : vector<8x128xbf16>, vector<128x128xbf16>, vector<8x128xf32> -> vector<8x128xf32>
    %c0_17 = arith.constant 0 : index
    %c0_18 = arith.constant 0 : index
    %26 = vector.load %arg7[%c0_17, %c0_18] : memref<1x128xf32, #tpu.memory_space<vmem>>, vector<1x128xf32>
    %27 = vector.broadcast %26 : vector<1x128xf32> to vector<8x128xf32>
    %28 = arith.addf %25, %27 : vector<8x128xf32>
    %29 = arith.truncf %28 : vector<8x128xf32> to vector<8x128xbf16>
    %c0_19 = arith.constant 0 : index
    %c0_20 = arith.constant 0 : index
    %30 = vector.load %arg8[%c0_19, %c0_20] : memref<8x128xbf16, #tpu.memory_space<vmem>>, vector<8x128xbf16>
    tpu.vector_store %arg8[%c0_19, %c0_20], %29 {strides = array<i32>} : memref<8x128xbf16, #tpu.memory_space<vmem>>, vector<8x128xbf16>,
    return
  }
  func.func @transform_0(%arg0: i32) -> (i32, i32) {
    %c0_i32 = arith.constant 0 : i32
    %c0_i32_0 = arith.constant 0 : i32
    return %arg0, %c0_i32 : i32, i32
  }
  func.func @transform_1(%arg0: i32) -> (i32, i32) {
    %c0_i32 = arith.constant 0 : i32
    %c0_i32_0 = arith.constant 0 : i32
    %c0_i32_1 = arith.constant 0 : i32
    return %c0_i32, %c0_i32_0 : i32, i32
  }
  func.func @transform_2(%arg0: i32) -> (i32, i32) {
    %c0_i32 = arith.constant 0 : i32
    %c0_i32_0 = arith.constant 0 : i32
    %c0_i32_1 = arith.constant 0 : i32
    return %c0_i32, %c0_i32_0 : i32, i32
  }
  func.func @transform_3(%arg0: i32) -> (i32, i32) {
    %c0_i32 = arith.constant 0 : i32
    %c0_i32_0 = arith.constant 0 : i32
    %c0_i32_1 = arith.constant 0 : i32
    return %c0_i32, %c0_i32_0 : i32, i32
  }
  func.func @transform_4(%arg0: i32) -> (i32, i32) {
    %c0_i32 = arith.constant 0 : i32
    %c0_i32_0 = arith.constant 0 : i32
    %c0_i32_1 = arith.constant 0 : i32
    return %c0_i32, %c0_i32_0 : i32, i32
  }
  func.func @transform_5(%arg0: i32) -> (i32, i32) {
    %c0_i32 = arith.constant 0 : i32
    %c0_i32_0 = arith.constant 0 : i32
    %c0_i32_1 = arith.constant 0 : i32
    return %c0_i32, %c0_i32_0 : i32, i32
  }
  func.func @transform_6(%arg0: i32) -> (i32, i32) {
    %c0_i32 = arith.constant 0 : i32
    %c0_i32_0 = arith.constant 0 : i32
    %c0_i32_1 = arith.constant 0 : i32
    return %c0_i32, %c0_i32_0 : i32, i32
  }
  func.func @transform_7(%arg0: i32) -> (i32, i32) {
    %c0_i32 = arith.constant 0 : i32
    %c0_i32_0 = arith.constant 0 : i32
    return %arg0, %c0_i32 : i32, i32
  }
}

</mosaic_0001>

<llo_original>
// kernel: classifier_forward.1
$region0: #{classifier_forward.1}
  #allocation0 [shape = 'u32[]', space=smem, size = 0x4, offset = 0x4, fixed_abs, tag = 'smem constant byte address 0x4 - core index']
  #allocation1 [shape = 'u32[72,128]{1,0:T(1,128)}', space=vmem, size = 0x9000, scoped, tag = 'internal scratch']
  %s0 = inlined_call_operand.vmem [shape: f32[8,1024], index: 0, kind: input, shape index: {}]
  %s1 = inlined_call_operand.hbm [shape: bf16[1024,256], index: 1, kind: input, shape index: {}]
  %s2 = inlined_call_operand.vmem [shape: f32[1,256], index: 2, kind: input, shape index: {}]
  %s3 = inlined_call_operand.hbm [shape: bf16[256,128], index: 3, kind: input, shape index: {}]
  %s4 = inlined_call_operand.vmem [shape: f32[1,128], index: 4, kind: input, shape index: {}]
  %s5 = inlined_call_operand.vmem [shape: bf16[128,128], index: 5, kind: input, shape index: {}]
  %s6 = inlined_call_operand.vmem [shape: f32[1,128], index: 6, kind: input, shape index: {}]
  %s7 = inlined_call_operand.vmem [shape: bf16[8,128], index: 7, kind: output, shape index: {}]
  %s8 = sld [smem:[#allocation0]]
  $region46: #{classifier_forward.1} parent=0
    _
  %s10 = ssub.s32 1, %s8
  %s11 = scalar_select 0, %s10, %s8
  $region1: #{classifier_forward.1} parent=0
    #allocation2 [shape = 'u8[524288]{0}', space=vmem, size = 0x80000, scoped, tag = 'input window, operand 1, single buffered']
    #allocation3 [shape = 's32[1]{0}', space=sflag, size = 0x4, scoped, tag = 'scoped memory for classifier_forward.1']
    #allocation4 [shape = 'u8[65536]{0}', space=vmem, size = 0x10000, scoped, tag = 'input window, operand 3, single buffered']
    #allocation5 [shape = 's32[1]{0}', space=sflag, size = 0x4, scoped, tag = 'scoped memory for classifier_forward.1']
    %12 = vsyncpa [#allocation3], 0
    %13 = vsyncpa [#allocation5], 0
    // Predicated region
    $region2: #{classifier_forward.1} parent=1 // pred_check
      _
    $region3: #{classifier_forward.1} parent=1 // pred_check_branch
      %15 = sbr.rel (0) target = $region5
    $region4: #{classifier_forward.1} parent=1 // pred_region
      _
    $region5: #{classifier_forward.1} parent=1 // pred_fallthru
      _
    // Predicated region
    $region6: #{classifier_forward.1} parent=1 // pred_check
      _
    $region7: #{classifier_forward.1} parent=1 // pred_check_branch
      %17 = sbr.rel (0) target = $region9
    $region8: #{classifier_forward.1} parent=1 // pred_region
      %19 = vsyncadd [#allocation3], 0
      %s20 = sshll.u32 %s1, 4
      %s21 = int_to_ptr.hbm [resolvable:$true] %s20
      %s22 = sshll.u32 [#allocation2], 4
      %s23 = int_to_ptr.vmem [resolvable:$true] %s22
      %28 = dma.hbm_to_vmem [thread:$0]  %s21, 16384, %s23, [#allocation3], 128, 128, 8
    $region9: #{classifier_forward.1} parent=1 // pred_fallthru
      _
    // Predicated region
    $region10: #{classifier_forward.1} parent=1 // pred_check
      _
    $region11: #{classifier_forward.1} parent=1 // pred_check_branch
      %30 = sbr.rel (0) target = $region13
    $region12: #{classifier_forward.1} parent=1 // pred_region
      _
    $region13: #{classifier_forward.1} parent=1 // pred_fallthru
      _
    // Predicated region
    $region14: #{classifier_forward.1} parent=1 // pred_check
      _
    $region15: #{classifier_forward.1} parent=1 // pred_check_branch
      %32 = sbr.rel (0) target = $region17
    $region16: #{classifier_forward.1} parent=1 // pred_region
      %34 = vsyncadd [#allocation5], 0
      %s35 = sshll.u32 %s3, 4
      %s36 = int_to_ptr.hbm [resolvable:$true] %s35
      %s37 = sshll.u32 [#allocation4], 4
      %s38 = int_to_ptr.vmem [resolvable:$true] %s37
      %43 = dma.hbm_to_vmem [thread:$0]  %s36, 2048, %s38, [#allocation5], 64, 64, 4
    $region17: #{classifier_forward.1} parent=1 // pred_fallthru
      _
    // Predicated region
    $region18: #{classifier_forward.1} parent=1 // pred_check
      _
    $region19: #{classifier_forward.1} parent=1 // pred_check_branch
      %45 = sbr.rel (0) target = $region21
    $region20: #{classifier_forward.1} parent=1 // pred_region
      _
    $region21: #{classifier_forward.1} parent=1 // pred_fallthru
      _
    // Predicated region
    $region22: #{classifier_forward.1} parent=1 // pred_check
      _
    $region23: #{classifier_forward.1} parent=1 // pred_check_branch
      %47 = sbr.rel (0) target = $region25
    $region24: #{classifier_forward.1} parent=1 // pred_region
      _
    $region25: #{classifier_forward.1} parent=1 // pred_fallthru
      _
    // Predicated region
    $region26: #{classifier_forward.1} parent=1 // pred_check
      _
    $region27: #{classifier_forward.1} parent=1 // pred_check_branch
      %49 = sbr.rel (0) target = $region29
    $region28: #{classifier_forward.1} parent=1 // pred_region
      _
    $region29: #{classifier_forward.1} parent=1 // pred_fallthru
      _
    // Predicated region
    $region30: #{classifier_forward.1} parent=1 // pred_check
      _
    $region31: #{classifier_forward.1} parent=1 // pred_check_branch
      %51 = sbr.rel (0) target = $region33
    $region32: #{classifier_forward.1} parent=1 // pred_region
      %53 = dma.done [#allocation3], 16384
    $region33: #{classifier_forward.1} parent=1 // pred_fallthru
      _
    // Predicated region
    $region34: #{classifier_forward.1} parent=1 // pred_check
      _
    $region35: #{classifier_forward.1} parent=1 // pred_check_branch
      %55 = sbr.rel (0) target = $region37
    $region36: #{classifier_forward.1} parent=1 // pred_region
      %57 = dma.done [#allocation5], 2048
    $region37: #{classifier_forward.1} parent=1 // pred_fallthru
      _
    %v58 = vld [vmem:[%s0] sm:$0xff]
    %v59 = vld [vmem:[%s0 + $0x8] sm:$0xff]
    %v60 = vld [vmem:[%s0 + $0x10] sm:$0xff]
    %v61 = vld [vmem:[%s0 + $0x18] sm:$0xff]
    %v62 = vld [vmem:[%s0 + $0x20] sm:$0xff]
    %v63 = vld [vmem:[%s0 + $0x28] sm:$0xff]
    %v64 = vld [vmem:[%s0 + $0x30] sm:$0xff]
    %v65 = vld [vmem:[%s0 + $0x38] sm:$0xff]
    %v66 = vpack.c.bf16 %v58, %v58
    %v67 = vpack.c.bf16 %v59, %v59
    %v68 = vpack.c.bf16 %v60, %v60
    %v69 = vpack.c.bf16 %v61, %v61
    %v70 = vpack.c.bf16 %v62, %v62
    %v71 = vpack.c.bf16 %v63, %v63
    %v72 = vpack.c.bf16 %v64, %v64
    %v73 = vpack.c.bf16 %v65, %v65
    %v74 = vld [vmem:[#allocation2] sm:$0xff]
    %v75 = vld [vmem:[#allocation2 + $0x8] sm:$0xff]
    %v76 = vld [vmem:[#allocation2 + $0x10] sm:$0xff]
    %v77 = vld [vmem:[#allocation2 + $0x18] sm:$0xff]
    %v78 = vld [vmem:[#allocation2 + $0x20] sm:$0xff]
    %v79 = vld [vmem:[#allocation2 + $0x28] sm:$0xff]
    %v80 = vld [vmem:[#allocation2 + $0x30] sm:$0xff]
    %v81 = vld [vmem:[#allocation2 + $0x38] sm:$0xff]
    %v82 = vld [vmem:[#allocation2 + $0x40] sm:$0xff]
    %v83 = vld [vmem:[#allocation2 + $0x48] sm:$0xff]
    %v84 = vld [vmem:[#allocation2 + $0x50] sm:$0xff]
    %v85 = vld [vmem:[#allocation2 + $0x58] sm:$0xff]
    %v86 = vld [vmem:[#allocation2 + $0x60] sm:$0xff]
    %v87 = vld [vmem:[#allocation2 + $0x68] sm:$0xff]
    %v88 = vld [vmem:[#allocation2 + $0x70] sm:$0xff]
    %v89 = vld [vmem:[#allocation2 + $0x78] sm:$0xff]
    %v90 = vld [vmem:[#allocation2 + $0x80] sm:$0xff]
    %v91 = vld [vmem:[#allocation2 + $0x88] sm:$0xff]
    %v92 = vld [vmem:[#allocation2 + $0x90] sm:$0xff]
    %v93 = vld [vmem:[#allocation2 + $0x98] sm:$0xff]
    %v94 = vld [vmem:[#allocation2 + $0xa0] sm:$0xff]
    %v95 = vld [vmem:[#allocation2 + $0xa8] sm:$0xff]
    %v96 = vld [vmem:[#allocation2 + $0xb0] sm:$0xff]
    %v97 = vld [vmem:[#allocation2 + $0xb8] sm:$0xff]
    %v98 = vld [vmem:[#allocation2 + $0xc0] sm:$0xff]
    %v99 = vld [vmem:[#allocation2 + $0xc8] sm:$0xff]
    %v100 = vld [vmem:[#allocation2 + $0xd0] sm:$0xff]
    %v101 = vld [vmem:[#allocation2 + $0xd8] sm:$0xff]
    %v102 = vld [vmem:[#allocation2 + $0xe0] sm:$0xff]
    %v103 = vld [vmem:[#allocation2 + $0xe8] sm:$0xff]
    %v104 = vld [vmem:[#allocation2 + $0xf0] sm:$0xff]
    %v105 = vld [vmem:[#allocation2 + $0xf8] sm:$0xff]
    %v106 = vld [vmem:[#allocation2 + $0x100] sm:$0xff]
    %v107 = vld [vmem:[#allocation2 + $0x108] sm:$0xff]
    %v108 = vld [vmem:[#allocation2 + $0x110] sm:$0xff]
    %v109 = vld [vmem:[#allocation2 + $0x118] sm:$0xff]
    %v110 = vld [vmem:[#allocation2 + $0x120] sm:$0xff]
    %v111 = vld [vmem:[#allocation2 + $0x128] sm:$0xff]
    %v112 = vld [vmem:[#allocation2 + $0x130] sm:$0xff]
    %v113 = vld [vmem:[#allocation2 + $0x138] sm:$0xff]
    %v114 = vld [vmem:[#allocation2 + $0x140] sm:$0xff]
    %v115 = vld [vmem:[#allocation2 + $0x148] sm:$0xff]
    %v116 = vld [vmem:[#allocation2 + $0x150] sm:$0xff]
    %v117 = vld [vmem:[#allocation2 + $0x158] sm:$0xff]
    %v118 = vld [vmem:[#allocation2 + $0x160] sm:$0xff]
    %v119 = vld [vmem:[#allocation2 + $0x168] sm:$0xff]
    %v120 = vld [vmem:[#allocation2 + $0x170] sm:$0xff]
    %v121 = vld [vmem:[#allocation2 + $0x178] sm:$0xff]
    %v122 = vld [vmem:[#allocation2 + $0x180] sm:$0xff]
    %v123 = vld [vmem:[#allocation2 + $0x188] sm:$0xff]
    %v124 = vld [vmem:[#allocation2 + $0x190] sm:$0xff]
    %v125 = vld [vmem:[#allocation2 + $0x198] sm:$0xff]
    %v126 = vld [vmem:[#allocation2 + $0x1a0] sm:$0xff]
    %v127 = vld [vmem:[#allocation2 + $0x1a8] sm:$0xff]
    %v128 = vld [vmem:[#allocation2 + $0x1b0] sm:$0xff]
    %v129 = vld [vmem:[#allocation2 + $0x1b8] sm:$0xff]
    %v130 = vld [vmem:[#allocation2 + $0x1c0] sm:$0xff]
    %v131 = vld [vmem:[#allocation2 + $0x1c8] sm:$0xff]
    %v132 = vld [vmem:[#allocation2 + $0x1d0] sm:$0xff]
    %v133 = vld [vmem:[#allocation2 + $0x1d8] sm:$0xff]
    %v134 = vld [vmem:[#allocation2 + $0x1e0] sm:$0xff]
    %v135 = vld [vmem:[#allocation2 + $0x1e8] sm:$0xff]
    %v136 = vld [vmem:[#allocation2 + $0x1f0] sm:$0xff]
    %v137 = vld [vmem:[#allocation2 + $0x1f8] sm:$0xff]
    %v138 = vld [vmem:[#allocation2 + $0x200] sm:$0xff]
    %v139 = vld [vmem:[#allocation2 + $0x208] sm:$0xff]
    %v140 = vld [vmem:[#allocation2 + $0x210] sm:$0xff]
    %v141 = vld [vmem:[#allocation2 + $0x218] sm:$0xff]
    %v142 = vld [vmem:[#allocation2 + $0x220] sm:$0xff]
    %v143 = vld [vmem:[#allocation2 + $0x228] sm:$0xff]
    %v144 = vld [vmem:[#allocation2 + $0x230] sm:$0xff]
    %v145 = vld [vmem:[#allocation2 + $0x238] sm:$0xff]
    %v146 = vld [vmem:[#allocation2 + $0x240] sm:$0xff]
    %v147 = vld [vmem:[#allocation2 + $0x248] sm:$0xff]
    %v148 = vld [vmem:[#allocation2 + $0x250] sm:$0xff]
    %v149 = vld [vmem:[#allocation2 + $0x258] sm:$0xff]
    %v150 = vld [vmem:[#allocation2 + $0x260] sm:$0xff]
    %v151 = vld [vmem:[#allocation2 + $0x268] sm:$0xff]
    %v152 = vld [vmem:[#allocation2 + $0x270] sm:$0xff]
    %v153 = vld [vmem:[#allocation2 + $0x278] sm:$0xff]
    %v154 = vld [vmem:[#allocation2 + $0x280] sm:$0xff]
    %v155 = vld [vmem:[#allocation2 + $0x288] sm:$0xff]
    %v156 = vld [vmem:[#allocation2 + $0x290] sm:$0xff]
    %v157 = vld [vmem:[#allocation2 + $0x298] sm:$0xff]
    %v158 = vld [vmem:[#allocation2 + $0x2a0] sm:$0xff]
    %v159 = vld [vmem:[#allocation2 + $0x2a8] sm:$0xff]
    %v160 = vld [vmem:[#allocation2 + $0x2b0] sm:$0xff]
    %v161 = vld [vmem:[#allocation2 + $0x2b8] sm:$0xff]
    %v162 = vld [vmem:[#allocation2 + $0x2c0] sm:$0xff]
    %v163 = vld [vmem:[#allocation2 + $0x2c8] sm:$0xff]
    %v164 = vld [vmem:[#allocation2 + $0x2d0] sm:$0xff]
    %v165 = vld [vmem:[#allocation2 + $0x2d8] sm:$0xff]
    %v166 = vld [vmem:[#allocation2 + $0x2e0] sm:$0xff]
    %v167 = vld [vmem:[#allocation2 + $0x2e8] sm:$0xff]
    %v168 = vld [vmem:[#allocation2 + $0x2f0] sm:$0xff]
    %v169 = vld [vmem:[#allocation2 + $0x2f8] sm:$0xff]
    %v170 = vld [vmem:[#allocation2 + $0x300] sm:$0xff]
    %v171 = vld [vmem:[#allocation2 + $0x308] sm:$0xff]
    %v172 = vld [vmem:[#allocation2 + $0x310] sm:$0xff]
    %v173 = vld [vmem:[#allocation2 + $0x318] sm:$0xff]
    %v174 = vld [vmem:[#allocation2 + $0x320] sm:$0xff]
    %v175 = vld [vmem:[#allocation2 + $0x328] sm:$0xff]
    %v176 = vld [vmem:[#allocation2 + $0x330] sm:$0xff]
    %v177 = vld [vmem:[#allocation2 + $0x338] sm:$0xff]
    %v178 = vld [vmem:[#allocation2 + $0x340] sm:$0xff]
    %v179 = vld [vmem:[#allocation2 + $0x348] sm:$0xff]
    %v180 = vld [vmem:[#allocation2 + $0x350] sm:$0xff]
    %v181 = vld [vmem:[#allocation2 + $0x358] sm:$0xff]
    %v182 = vld [vmem:[#allocation2 + $0x360] sm:$0xff]
    %v183 = vld [vmem:[#allocation2 + $0x368] sm:$0xff]
    %v184 = vld [vmem:[#allocation2 + $0x370] sm:$0xff]
    %v185 = vld [vmem:[#allocation2 + $0x378] sm:$0xff]
    %v186 = vld [vmem:[#allocation2 + $0x380] sm:$0xff]
    %v187 = vld [vmem:[#allocation2 + $0x388] sm:$0xff]
    %v188 = vld [vmem:[#allocation2 + $0x390] sm:$0xff]
    %v189 = vld [vmem:[#allocation2 + $0x398] sm:$0xff]
    %v190 = vld [vmem:[#allocation2 + $0x3a0] sm:$0xff]
    %v191 = vld [vmem:[#allocation2 + $0x3a8] sm:$0xff]
    %v192 = vld [vmem:[#allocation2 + $0x3b0] sm:$0xff]
    %v193 = vld [vmem:[#allocation2 + $0x3b8] sm:$0xff]
    %v194 = vld [vmem:[#allocation2 + $0x3c0] sm:$0xff]
    %v195 = vld [vmem:[#allocation2 + $0x3c8] sm:$0xff]
    %v196 = vld [vmem:[#allocation2 + $0x3d0] sm:$0xff]
    %v197 = vld [vmem:[#allocation2 + $0x3d8] sm:$0xff]
    %v198 = vld [vmem:[#allocation2 + $0x3e0] sm:$0xff]
    %v199 = vld [vmem:[#allocation2 + $0x3e8] sm:$0xff]
    %v200 = vld [vmem:[#allocation2 + $0x3f0] sm:$0xff]
    %v201 = vld [vmem:[#allocation2 + $0x3f8] sm:$0xff]
    %v202 = vld [vmem:[%s2] sm:$0x3]
    %v204 = vperm.slane %v202, 0
    %v205 = vperm.slane %v202, 1
    %v336 = vunpack.c.l.b16 %v74
    %v337 = vunpack.c.h.b16 %v74
    %v338 = vunpack.c.l.b16 %v75
    %v339 = vunpack.c.h.b16 %v75
    %v340 = vunpack.c.l.b16 %v76
    %v341 = vunpack.c.h.b16 %v76
    %v342 = vunpack.c.l.b16 %v77
    %v343 = vunpack.c.h.b16 %v77
    %v344 = vunpack.c.l.b16 %v78
    %v345 = vunpack.c.h.b16 %v78
    %v346 = vunpack.c.l.b16 %v79
    %v347 = vunpack.c.h.b16 %v79
    %v348 = vunpack.c.l.b16 %v80
    %v349 = vunpack.c.h.b16 %v80
    %v350 = vunpack.c.l.b16 %v81
    %v351 = vunpack.c.h.b16 %v81
    %v352 = vunpack.c.l.b16 %v82
    %v353 = vunpack.c.h.b16 %v82
    %v354 = vunpack.c.l.b16 %v83
    %v355 = vunpack.c.h.b16 %v83
    %v356 = vunpack.c.l.b16 %v84
    %v357 = vunpack.c.h.b16 %v84
    %v358 = vunpack.c.l.b16 %v85
    %v359 = vunpack.c.h.b16 %v85
    %v360 = vunpack.c.l.b16 %v86
    %v361 = vunpack.c.h.b16 %v86
    %v362 = vunpack.c.l.b16 %v87
    %v363 = vunpack.c.h.b16 %v87
    %v364 = vunpack.c.l.b16 %v88
    %v365 = vunpack.c.h.b16 %v88
    %v366 = vunpack.c.l.b16 %v89
    %v367 = vunpack.c.h.b16 %v89
    %v368 = vunpack.c.l.b16 %v90
    %v369 = vunpack.c.h.b16 %v90
    %v370 = vunpack.c.l.b16 %v91
    %v371 = vunpack.c.h.b16 %v91
    %v372 = vunpack.c.l.b16 %v92
    %v373 = vunpack.c.h.b16 %v92
    %v374 = vunpack.c.l.b16 %v93
    %v375 = vunpack.c.h.b16 %v93
    %v376 = vunpack.c.l.b16 %v94
    %v377 = vunpack.c.h.b16 %v94
    %v378 = vunpack.c.l.b16 %v95
    %v379 = vunpack.c.h.b16 %v95
    %v380 = vunpack.c.l.b16 %v96
    %v381 = vunpack.c.h.b16 %v96
    %v382 = vunpack.c.l.b16 %v97
    %v383 = vunpack.c.h.b16 %v97
    %v384 = vunpack.c.l.b16 %v98
    %v385 = vunpack.c.h.b16 %v98
    %v386 = vunpack.c.l.b16 %v99
    %v387 = vunpack.c.h.b16 %v99
    %v388 = vunpack.c.l.b16 %v100
    %v389 = vunpack.c.h.b16 %v100
    %v390 = vunpack.c.l.b16 %v101
    %v391 = vunpack.c.h.b16 %v101
    %v392 = vunpack.c.l.b16 %v102
    %v393 = vunpack.c.h.b16 %v102
    %v394 = vunpack.c.l.b16 %v103
    %v395 = vunpack.c.h.b16 %v103
    %v396 = vunpack.c.l.b16 %v104
    %v397 = vunpack.c.h.b16 %v104
    %v398 = vunpack.c.l.b16 %v105
    %v399 = vunpack.c.h.b16 %v105
    %v400 = vunpack.c.l.b16 %v106
    %v401 = vunpack.c.h.b16 %v106
    %v402 = vunpack.c.l.b16 %v107
    %v403 = vunpack.c.h.b16 %v107
    %v404 = vunpack.c.l.b16 %v108
    %v405 = vunpack.c.h.b16 %v108
    %v406 = vunpack.c.l.b16 %v109
    %v407 = vunpack.c.h.b16 %v109
    %v408 = vunpack.c.l.b16 %v110
    %v409 = vunpack.c.h.b16 %v110
    %v410 = vunpack.c.l.b16 %v111
    %v411 = vunpack.c.h.b16 %v111
    %v412 = vunpack.c.l.b16 %v112
    %v413 = vunpack.c.h.b16 %v112
    %v414 = vunpack.c.l.b16 %v113
    %v415 = vunpack.c.h.b16 %v113
    %v416 = vunpack.c.l.b16 %v114
    %v417 = vunpack.c.h.b16 %v114
    %v418 = vunpack.c.l.b16 %v115
    %v419 = vunpack.c.h.b16 %v115
    %v420 = vunpack.c.l.b16 %v116
    %v421 = vunpack.c.h.b16 %v116
    %v422 = vunpack.c.l.b16 %v117
    %v423 = vunpack.c.h.b16 %v117
    %v424 = vunpack.c.l.b16 %v118
    %v425 = vunpack.c.h.b16 %v118
    %v426 = vunpack.c.l.b16 %v119
    %v427 = vunpack.c.h.b16 %v119
    %v428 = vunpack.c.l.b16 %v120
    %v429 = vunpack.c.h.b16 %v120
    %v430 = vunpack.c.l.b16 %v121
    %v431 = vunpack.c.h.b16 %v121
    %v432 = vunpack.c.l.b16 %v122
    %v433 = vunpack.c.h.b16 %v122
    %v434 = vunpack.c.l.b16 %v123
    %v435 = vunpack.c.h.b16 %v123
    %v436 = vunpack.c.l.b16 %v124
    %v437 = vunpack.c.h.b16 %v124
    %v438 = vunpack.c.l.b16 %v125
    %v439 = vunpack.c.h.b16 %v125
    %v440 = vunpack.c.l.b16 %v126
    %v441 = vunpack.c.h.b16 %v126
    %v442 = vunpack.c.l.b16 %v127
    %v443 = vunpack.c.h.b16 %v127
    %v444 = vunpack.c.l.b16 %v128
    %v445 = vunpack.c.h.b16 %v128
    %v446 = vunpack.c.l.b16 %v129
    %v447 = vunpack.c.h.b16 %v129
    %v448 = vunpack.c.l.b16 %v130
    %v449 = vunpack.c.h.b16 %v130
    %v450 = vunpack.c.l.b16 %v131
    %v451 = vunpack.c.h.b16 %v131
    %v452 = vunpack.c.l.b16 %v132
    %v453 = vunpack.c.h.b16 %v132
    %v454 = vunpack.c.l.b16 %v133
    %v455 = vunpack.c.h.b16 %v133
    %v456 = vunpack.c.l.b16 %v134
    %v457 = vunpack.c.h.b16 %v134
    %v458 = vunpack.c.l.b16 %v135
    %v459 = vunpack.c.h.b16 %v135
    %v460 = vunpack.c.l.b16 %v136
    %v461 = vunpack.c.h.b16 %v136
    %v462 = vunpack.c.l.b16 %v137
    %v463 = vunpack.c.h.b16 %v137
    %v464 = vunpack.c.l.b16 %v138
    %v465 = vunpack.c.h.b16 %v138
    %v466 = vunpack.c.l.b16 %v139
    %v467 = vunpack.c.h.b16 %v139
    %v468 = vunpack.c.l.b16 %v140
    %v469 = vunpack.c.h.b16 %v140
    %v470 = vunpack.c.l.b16 %v141
    %v471 = vunpack.c.h.b16 %v141
    %v472 = vunpack.c.l.b16 %v142
    %v473 = vunpack.c.h.b16 %v142
    %v474 = vunpack.c.l.b16 %v143
    %v475 = vunpack.c.h.b16 %v143
    %v476 = vunpack.c.l.b16 %v144
    %v477 = vunpack.c.h.b16 %v144
    %v478 = vunpack.c.l.b16 %v145
    %v479 = vunpack.c.h.b16 %v145
    %v480 = vunpack.c.l.b16 %v146
    %v481 = vunpack.c.h.b16 %v146
    %v482 = vunpack.c.l.b16 %v147
    %v483 = vunpack.c.h.b16 %v147
    %v484 = vunpack.c.l.b16 %v148
    %v485 = vunpack.c.h.b16 %v148
    %v486 = vunpack.c.l.b16 %v149
    %v487 = vunpack.c.h.b16 %v149
    %v488 = vunpack.c.l.b16 %v150
    %v489 = vunpack.c.h.b16 %v150
    %v490 = vunpack.c.l.b16 %v151
    %v491 = vunpack.c.h.b16 %v151
    %v492 = vunpack.c.l.b16 %v152
    %v493 = vunpack.c.h.b16 %v152
    %v494 = vunpack.c.l.b16 %v153
    %v495 = vunpack.c.h.b16 %v153
    %v496 = vunpack.c.l.b16 %v154
    %v497 = vunpack.c.h.b16 %v154
    %v498 = vunpack.c.l.b16 %v155
    %v499 = vunpack.c.h.b16 %v155
    %v500 = vunpack.c.l.b16 %v156
    %v501 = vunpack.c.h.b16 %v156
    %v502 = vunpack.c.l.b16 %v157
    %v503 = vunpack.c.h.b16 %v157
    %v504 = vunpack.c.l.b16 %v158
    %v505 = vunpack.c.h.b16 %v158
    %v506 = vunpack.c.l.b16 %v159
    %v507 = vunpack.c.h.b16 %v159
    %v508 = vunpack.c.l.b16 %v160
    %v509 = vunpack.c.h.b16 %v160
    %v510 = vunpack.c.l.b16 %v161
    %v511 = vunpack.c.h.b16 %v161
    %v512 = vunpack.c.l.b16 %v162
    %v513 = vunpack.c.h.b16 %v162
    %v514 = vunpack.c.l.b16 %v163
    %v515 = vunpack.c.h.b16 %v163
    %v516 = vunpack.c.l.b16 %v164
    %v517 = vunpack.c.h.b16 %v164
    %v518 = vunpack.c.l.b16 %v165
    %v519 = vunpack.c.h.b16 %v165
    %v520 = vunpack.c.l.b16 %v166
    %v521 = vunpack.c.h.b16 %v166
    %v522 = vunpack.c.l.b16 %v167
    %v523 = vunpack.c.h.b16 %v167
    %v524 = vunpack.c.l.b16 %v168
    %v525 = vunpack.c.h.b16 %v168
    %v526 = vunpack.c.l.b16 %v169
    %v527 = vunpack.c.h.b16 %v169
    %v528 = vunpack.c.l.b16 %v170
    %v529 = vunpack.c.h.b16 %v170
    %v530 = vunpack.c.l.b16 %v171
    %v531 = vunpack.c.h.b16 %v171
    %v532 = vunpack.c.l.b16 %v172
    %v533 = vunpack.c.h.b16 %v172
    %v534 = vunpack.c.l.b16 %v173
    %v535 = vunpack.c.h.b16 %v173
    %v536 = vunpack.c.l.b16 %v174
    %v537 = vunpack.c.h.b16 %v174
    %v538 = vunpack.c.l.b16 %v175
    %v539 = vunpack.c.h.b16 %v175
    %v540 = vunpack.c.l.b16 %v176
    %v541 = vunpack.c.h.b16 %v176
    %v542 = vunpack.c.l.b16 %v177
    %v543 = vunpack.c.h.b16 %v177
    %v544 = vunpack.c.l.b16 %v178
    %v545 = vunpack.c.h.b16 %v178
    %v546 = vunpack.c.l.b16 %v179
    %v547 = vunpack.c.h.b16 %v179
    %v548 = vunpack.c.l.b16 %v180
    %v549 = vunpack.c.h.b16 %v180
    %v550 = vunpack.c.l.b16 %v181
    %v551 = vunpack.c.h.b16 %v181
    %v552 = vunpack.c.l.b16 %v182
    %v553 = vunpack.c.h.b16 %v182
    %v554 = vunpack.c.l.b16 %v183
    %v555 = vunpack.c.h.b16 %v183
    %v556 = vunpack.c.l.b16 %v184
    %v557 = vunpack.c.h.b16 %v184
    %v558 = vunpack.c.l.b16 %v185
    %v559 = vunpack.c.h.b16 %v185
    %v560 = vunpack.c.l.b16 %v186
    %v561 = vunpack.c.h.b16 %v186
    %v562 = vunpack.c.l.b16 %v187
    %v563 = vunpack.c.h.b16 %v187
    %v564 = vunpack.c.l.b16 %v188
    %v565 = vunpack.c.h.b16 %v188
    %v566 = vunpack.c.l.b16 %v189
    %v567 = vunpack.c.h.b16 %v189
    %v568 = vunpack.c.l.b16 %v190
    %v569 = vunpack.c.h.b16 %v190
    %v570 = vunpack.c.l.b16 %v191
    %v571 = vunpack.c.h.b16 %v191
    %v572 = vunpack.c.l.b16 %v192
    %v573 = vunpack.c.h.b16 %v192
    %v574 = vunpack.c.l.b16 %v193
    %v575 = vunpack.c.h.b16 %v193
    %v576 = vunpack.c.l.b16 %v194
    %v577 = vunpack.c.h.b16 %v194
    %v578 = vunpack.c.l.b16 %v195
    %v579 = vunpack.c.h.b16 %v195
    %v580 = vunpack.c.l.b16 %v196
    %v581 = vunpack.c.h.b16 %v196
    %v582 = vunpack.c.l.b16 %v197
    %v583 = vunpack.c.h.b16 %v197
    %v584 = vunpack.c.l.b16 %v198
    %v585 = vunpack.c.h.b16 %v198
    %v586 = vunpack.c.l.b16 %v199
    %v587 = vunpack.c.h.b16 %v199
    %v588 = vunpack.c.l.b16 %v200
    %v589 = vunpack.c.h.b16 %v200
    %v590 = vunpack.c.l.b16 %v201
    %v591 = vunpack.c.h.b16 %v201
    %v592 = vpack.c.b16 %v338, %v336
    %v593 = vpack.c.b16 %v339, %v337
    %v594 = vpack.c.b16 %v342, %v340
    %v595 = vpack.c.b16 %v343, %v341
    %v596 = vpack.c.b16 %v346, %v344
    %v597 = vpack.c.b16 %v347, %v345
    %v598 = vpack.c.b16 %v350, %v348
    %v599 = vpack.c.b16 %v351, %v349
    %v600 = vpack.c.b16 %v354, %v352
    %v601 = vpack.c.b16 %v355, %v353
    %v602 = vpack.c.b16 %v358, %v356
    %v603 = vpack.c.b16 %v359, %v357
    %v604 = vpack.c.b16 %v362, %v360
    %v605 = vpack.c.b16 %v363, %v361
    %v606 = vpack.c.b16 %v366, %v364
    %v607 = vpack.c.b16 %v367, %v365
    %v608 = vpack.c.b16 %v370, %v368
    %v609 = vpack.c.b16 %v371, %v369
    %v610 = vpack.c.b16 %v374, %v372
    %v611 = vpack.c.b16 %v375, %v373
    %v612 = vpack.c.b16 %v378, %v376
    %v613 = vpack.c.b16 %v379, %v377
    %v614 = vpack.c.b16 %v382, %v380
    %v615 = vpack.c.b16 %v383, %v381
    %v616 = vpack.c.b16 %v386, %v384
    %v617 = vpack.c.b16 %v387, %v385
    %v618 = vpack.c.b16 %v390, %v388
    %v619 = vpack.c.b16 %v391, %v389
    %v620 = vpack.c.b16 %v394, %v392
    %v621 = vpack.c.b16 %v395, %v393
    %v622 = vpack.c.b16 %v398, %v396
    %v623 = vpack.c.b16 %v399, %v397
    %v624 = vpack.c.b16 %v402, %v400
    %v625 = vpack.c.b16 %v403, %v401
    %v626 = vpack.c.b16 %v406, %v404
    %v627 = vpack.c.b16 %v407, %v405
    %v628 = vpack.c.b16 %v410, %v408
    %v629 = vpack.c.b16 %v411, %v409
    %v630 = vpack.c.b16 %v414, %v412
    %v631 = vpack.c.b16 %v415, %v413
    %v632 = vpack.c.b16 %v418, %v416
    %v633 = vpack.c.b16 %v419, %v417
    %v634 = vpack.c.b16 %v422, %v420
    %v635 = vpack.c.b16 %v423, %v421
    %v636 = vpack.c.b16 %v426, %v424
    %v637 = vpack.c.b16 %v427, %v425
    %v638 = vpack.c.b16 %v430, %v428
    %v639 = vpack.c.b16 %v431, %v429
    %v640 = vpack.c.b16 %v434, %v432
    %v641 = vpack.c.b16 %v435, %v433
    %v642 = vpack.c.b16 %v438, %v436
    %v643 = vpack.c.b16 %v439, %v437
    %v644 = vpack.c.b16 %v442, %v440
    %v645 = vpack.c.b16 %v443, %v441
    %v646 = vpack.c.b16 %v446, %v444
    %v647 = vpack.c.b16 %v447, %v445
    %v648 = vpack.c.b16 %v450, %v448
    %v649 = vpack.c.b16 %v451, %v449
    %v650 = vpack.c.b16 %v454, %v452
    %v651 = vpack.c.b16 %v455, %v453
    %v652 = vpack.c.b16 %v458, %v456
    %v653 = vpack.c.b16 %v459, %v457
    %v654 = vpack.c.b16 %v462, %v460
    %v655 = vpack.c.b16 %v463, %v461
    %v656 = vpack.c.b16 %v466, %v464
    %v657 = vpack.c.b16 %v467, %v465
    %v658 = vpack.c.b16 %v470, %v468
    %v659 = vpack.c.b16 %v471, %v469
    %v660 = vpack.c.b16 %v474, %v472
    %v661 = vpack.c.b16 %v475, %v473
    %v662 = vpack.c.b16 %v478, %v476
    %v663 = vpack.c.b16 %v479, %v477
    %v664 = vpack.c.b16 %v482, %v480
    %v665 = vpack.c.b16 %v483, %v481
    %v666 = vpack.c.b16 %v486, %v484
    %v667 = vpack.c.b16 %v487, %v485
    %v668 = vpack.c.b16 %v490, %v488
    %v669 = vpack.c.b16 %v491, %v489
    %v670 = vpack.c.b16 %v494, %v492
    %v671 = vpack.c.b16 %v495, %v493
    %v672 = vpack.c.b16 %v498, %v496
    %v673 = vpack.c.b16 %v499, %v497
    %v674 = vpack.c.b16 %v502, %v500
    %v675 = vpack.c.b16 %v503, %v501
    %v676 = vpack.c.b16 %v506, %v504
    %v677 = vpack.c.b16 %v507, %v505
    %v678 = vpack.c.b16 %v510, %v508
    %v679 = vpack.c.b16 %v511, %v509
    %v680 = vpack.c.b16 %v514, %v512
    %v681 = vpack.c.b16 %v515, %v513
    %v682 = vpack.c.b16 %v518, %v516
    %v683 = vpack.c.b16 %v519, %v517
    %v684 = vpack.c.b16 %v522, %v520
    %v685 = vpack.c.b16 %v523, %v521
    %v686 = vpack.c.b16 %v526, %v524
    %v687 = vpack.c.b16 %v527, %v525
    %v688 = vpack.c.b16 %v530, %v528
    %v689 = vpack.c.b16 %v531, %v529
    %v690 = vpack.c.b16 %v534, %v532
    %v691 = vpack.c.b16 %v535, %v533
    %v692 = vpack.c.b16 %v538, %v536
    %v693 = vpack.c.b16 %v539, %v537
    %v694 = vpack.c.b16 %v542, %v540
    %v695 = vpack.c.b16 %v543, %v541
    %v696 = vpack.c.b16 %v546, %v544
    %v697 = vpack.c.b16 %v547, %v545
    %v698 = vpack.c.b16 %v550, %v548
    %v699 = vpack.c.b16 %v551, %v549
    %v700 = vpack.c.b16 %v554, %v552
    %v701 = vpack.c.b16 %v555, %v553
    %v702 = vpack.c.b16 %v558, %v556
    %v703 = vpack.c.b16 %v559, %v557
    %v704 = vpack.c.b16 %v562, %v560
    %v705 = vpack.c.b16 %v563, %v561
    %v706 = vpack.c.b16 %v566, %v564
    %v707 = vpack.c.b16 %v567, %v565
    %v708 = vpack.c.b16 %v570, %v568
    %v709 = vpack.c.b16 %v571, %v569
    %v710 = vpack.c.b16 %v574, %v572
    %v711 = vpack.c.b16 %v575, %v573
    %v712 = vpack.c.b16 %v578, %v576
    %v713 = vpack.c.b16 %v579, %v577
    %v714 = vpack.c.b16 %v582, %v580
    %v715 = vpack.c.b16 %v583, %v581
    %v716 = vpack.c.b16 %v586, %v584
    %v717 = vpack.c.b16 %v587, %v585
    %v718 = vpack.c.b16 %v590, %v588
    %v719 = vpack.c.b16 %v591, %v589
    %848 = vmatpush.bf16.msra.mxu0 %v606
    %849 = vmatpush.bf16.msra.mxu0 %v604
    %850 = vmatpush.bf16.msra.mxu0 %v602
    %851 = vmatpush.bf16.msra.mxu0 %v600
    %852 = vmatpush.bf16.msra.mxu0 %v598
    %853 = vmatpush.bf16.msra.mxu0 %v596
    %854 = vmatpush.bf16.msra.mxu0 %v594
    %855 = vmatpush.bf16.msra.mxu0 %v592
    %856 = vmatmul.bf16.gmra.mxu0 %v66
    %v857 = vpop.f32.mrf.mxu0
    %v858 = vadd.f32 %v204, %v857
    %v859 = vpop.f32.mrf.mxu0
    %860 = vdwg.mxu0
    %861 = vmatpush.bf16.msra.mxu0 %v622
    %862 = vmatpush.bf16.msra.mxu0 %v620
    %863 = vmatpush.bf16.msra.mxu0 %v618
    %864 = vmatpush.bf16.msra.mxu0 %v616
    %865 = vmatpush.bf16.msra.mxu0 %v614
    %866 = vmatpush.bf16.msra.mxu0 %v612
    %867 = vmatpush.bf16.msra.mxu0 %v610
    %868 = vmatpush.bf16.msra.mxu0 %v608
    %869 = vmatmul.bf16.gmra.mxu0 %v67
    %v870 = vpop.f32.mrf.mxu0
    %v871 = vadd.f32 %v858, %v870
    %v872 = vpop.f32.mrf.mxu0
    %873 = vdwg.mxu0
    %874 = vmatpush.bf16.msra.mxu0 %v638
    %875 = vmatpush.bf16.msra.mxu0 %v636
    %876 = vmatpush.bf16.msra.mxu0 %v634
    %877 = vmatpush.bf16.msra.mxu0 %v632
    %878 = vmatpush.bf16.msra.mxu0 %v630
    %879 = vmatpush.bf16.msra.mxu0 %v628
    %880 = vmatpush.bf16.msra.mxu0 %v626
    %881 = vmatpush.bf16.msra.mxu0 %v624
    %882 = vmatmul.bf16.gmra.mxu0 %v68
    %v883 = vpop.f32.mrf.mxu0
    %v884 = vadd.f32 %v871, %v883
    %v885 = vpop.f32.mrf.mxu0
    %886 = vdwg.mxu0
    %887 = vmatpush.bf16.msra.mxu0 %v654
    %888 = vmatpush.bf16.msra.mxu0 %v652
    %889 = vmatpush.bf16.msra.mxu0 %v650
    %890 = vmatpush.bf16.msra.mxu0 %v648
    %891 = vmatpush.bf16.msra.mxu0 %v646
    %892 = vmatpush.bf16.msra.mxu0 %v644
    %893 = vmatpush.bf16.msra.mxu0 %v642
    %894 = vmatpush.bf16.msra.mxu0 %v640
    %895 = vmatmul.bf16.gmra.mxu0 %v69
    %v896 = vpop.f32.mrf.mxu0
    %v897 = vadd.f32 %v884, %v896
    %v898 = vpop.f32.mrf.mxu0
    %899 = vdwg.mxu0
    %900 = vmatpush.bf16.msra.mxu0 %v670
    %901 = vmatpush.bf16.msra.mxu0 %v668
    %902 = vmatpush.bf16.msra.mxu0 %v666
    %903 = vmatpush.bf16.msra.mxu0 %v664
    %904 = vmatpush.bf16.msra.mxu0 %v662
    %905 = vmatpush.bf16.msra.mxu0 %v660
    %906 = vmatpush.bf16.msra.mxu0 %v658
    %907 = vmatpush.bf16.msra.mxu0 %v656
    %908 = vmatmul.bf16.gmra.mxu0 %v70
    %v909 = vpop.f32.mrf.mxu0
    %v910 = vadd.f32 %v897, %v909
    %v911 = vpop.f32.mrf.mxu0
    %912 = vdwg.mxu0
    %913 = vmatpush.bf16.msra.mxu0 %v686
    %914 = vmatpush.bf16.msra.mxu0 %v684
    %915 = vmatpush.bf16.msra.mxu0 %v682
    %916 = vmatpush.bf16.msra.mxu0 %v680
    %917 = vmatpush.bf16.msra.mxu0 %v678
    %918 = vmatpush.bf16.msra.mxu0 %v676
    %919 = vmatpush.bf16.msra.mxu0 %v674
    %920 = vmatpush.bf16.msra.mxu0 %v672
    %921 = vmatmul.bf16.gmra.mxu0 %v71
    %v922 = vpop.f32.mrf.mxu0
    %v923 = vadd.f32 %v910, %v922
    %v924 = vpop.f32.mrf.mxu0
    %925 = vdwg.mxu0
    %926 = vmatpush.bf16.msra.mxu0 %v702
    %927 = vmatpush.bf16.msra.mxu0 %v700
    %928 = vmatpush.bf16.msra.mxu0 %v698
    %929 = vmatpush.bf16.msra.mxu0 %v696
    %930 = vmatpush.bf16.msra.mxu0 %v694
    %931 = vmatpush.bf16.msra.mxu0 %v692
    %932 = vmatpush.bf16.msra.mxu0 %v690
    %933 = vmatpush.bf16.msra.mxu0 %v688
    %934 = vmatmul.bf16.gmra.mxu0 %v72
    %v935 = vpop.f32.mrf.mxu0
    %v936 = vadd.f32 %v923, %v935
    %v937 = vpop.f32.mrf.mxu0
    %938 = vdwg.mxu0
    %939 = vmatpush.bf16.msra.mxu0 %v718
    %940 = vmatpush.bf16.msra.mxu0 %v716
    %941 = vmatpush.bf16.msra.mxu0 %v714
    %942 = vmatpush.bf16.msra.mxu0 %v712
    %943 = vmatpush.bf16.msra.mxu0 %v710
    %944 = vmatpush.bf16.msra.mxu0 %v708
    %945 = vmatpush.bf16.msra.mxu0 %v706
    %946 = vmatpush.bf16.msra.mxu0 %v704
    %947 = vmatmul.bf16.gmra.mxu0 %v73
    %v948 = vpop.f32.mrf.mxu0
    %v949 = vadd.f32 %v936, %v948
    %v950 = vpop.f32.mrf.mxu0
    %951 = vdwg.mxu0
    %952 = vmatpush.bf16.msra.mxu0 %v607
    %953 = vmatpush.bf16.msra.mxu0 %v605
    %954 = vmatpush.bf16.msra.mxu0 %v603
    %955 = vmatpush.bf16.msra.mxu0 %v601
    %956 = vmatpush.bf16.msra.mxu0 %v599
    %957 = vmatpush.bf16.msra.mxu0 %v597
    %958 = vmatpush.bf16.msra.mxu0 %v595
    %959 = vmatpush.bf16.msra.mxu0 %v593
    %960 = vmatmul.bf16.gmra.mxu0 %v66
    %v961 = vpop.f32.mrf.mxu0
    %v962 = vadd.f32 %v205, %v961
    %v963 = vpop.f32.mrf.mxu0
    %964 = vdwg.mxu0
    %965 = vmatpush.bf16.msra.mxu0 %v623
    %966 = vmatpush.bf16.msra.mxu0 %v621
    %967 = vmatpush.bf16.msra.mxu0 %v619
    %968 = vmatpush.bf16.msra.mxu0 %v617
    %969 = vmatpush.bf16.msra.mxu0 %v615
    %970 = vmatpush.bf16.msra.mxu0 %v613
    %971 = vmatpush.bf16.msra.mxu0 %v611
    %972 = vmatpush.bf16.msra.mxu0 %v609
    %973 = vmatmul.bf16.gmra.mxu0 %v67
    %v974 = vpop.f32.mrf.mxu0
    %v975 = vadd.f32 %v962, %v974
    %v976 = vpop.f32.mrf.mxu0
    %977 = vdwg.mxu0
    %978 = vmatpush.bf16.msra.mxu0 %v639
    %979 = vmatpush.bf16.msra.mxu0 %v637
    %980 = vmatpush.bf16.msra.mxu0 %v635
    %981 = vmatpush.bf16.msra.mxu0 %v633
    %982 = vmatpush.bf16.msra.mxu0 %v631
    %983 = vmatpush.bf16.msra.mxu0 %v629
    %984 = vmatpush.bf16.msra.mxu0 %v627
    %985 = vmatpush.bf16.msra.mxu0 %v625
    %986 = vmatmul.bf16.gmra.mxu0 %v68
    %v987 = vpop.f32.mrf.mxu0
    %v988 = vadd.f32 %v975, %v987
    %v989 = vpop.f32.mrf.mxu0
    %990 = vdwg.mxu0
    %991 = vmatpush.bf16.msra.mxu0 %v655
    %992 = vmatpush.bf16.msra.mxu0 %v653
    %993 = vmatpush.bf16.msra.mxu0 %v651
    %994 = vmatpush.bf16.msra.mxu0 %v649
    %995 = vmatpush.bf16.msra.mxu0 %v647
    %996 = vmatpush.bf16.msra.mxu0 %v645
    %997 = vmatpush.bf16.msra.mxu0 %v643
    %998 = vmatpush.bf16.msra.mxu0 %v641
    %999 = vmatmul.bf16.gmra.mxu0 %v69
    %v1000 = vpop.f32.mrf.mxu0
    %v1001 = vadd.f32 %v988, %v1000
    %v1002 = vpop.f32.mrf.mxu0
    %1003 = vdwg.mxu0
    %1004 = vmatpush.bf16.msra.mxu0 %v671
    %1005 = vmatpush.bf16.msra.mxu0 %v669
    %1006 = vmatpush.bf16.msra.mxu0 %v667
    %1007 = vmatpush.bf16.msra.mxu0 %v665
    %1008 = vmatpush.bf16.msra.mxu0 %v663
    %1009 = vmatpush.bf16.msra.mxu0 %v661
    %1010 = vmatpush.bf16.msra.mxu0 %v659
    %1011 = vmatpush.bf16.msra.mxu0 %v657
    %1012 = vmatmul.bf16.gmra.mxu0 %v70
    %v1013 = vpop.f32.mrf.mxu0
    %v1014 = vadd.f32 %v1001, %v1013
    %v1015 = vpop.f32.mrf.mxu0
    %1016 = vdwg.mxu0
    %1017 = vmatpush.bf16.msra.mxu0 %v687
    %1018 = vmatpush.bf16.msra.mxu0 %v685
    %1019 = vmatpush.bf16.msra.mxu0 %v683
    %1020 = vmatpush.bf16.msra.mxu0 %v681
    %1021 = vmatpush.bf16.msra.mxu0 %v679
    %1022 = vmatpush.bf16.msra.mxu0 %v677
    %1023 = vmatpush.bf16.msra.mxu0 %v675
    %1024 = vmatpush.bf16.msra.mxu0 %v673
    %1025 = vmatmul.bf16.gmra.mxu0 %v71
    %v1026 = vpop.f32.mrf.mxu0
    %v1027 = vadd.f32 %v1014, %v1026
    %v1028 = vpop.f32.mrf.mxu0
    %1029 = vdwg.mxu0
    %1030 = vmatpush.bf16.msra.mxu0 %v703
    %1031 = vmatpush.bf16.msra.mxu0 %v701
    %1032 = vmatpush.bf16.msra.mxu0 %v699
    %1033 = vmatpush.bf16.msra.mxu0 %v697
    %1034 = vmatpush.bf16.msra.mxu0 %v695
    %1035 = vmatpush.bf16.msra.mxu0 %v693
    %1036 = vmatpush.bf16.msra.mxu0 %v691
    %1037 = vmatpush.bf16.msra.mxu0 %v689
    %1038 = vmatmul.bf16.gmra.mxu0 %v72
    %v1039 = vpop.f32.mrf.mxu0
    %v1040 = vadd.f32 %v1027, %v1039
    %v1041 = vpop.f32.mrf.mxu0
    %1042 = vdwg.mxu0
    %1043 = vmatpush.bf16.msra.mxu0 %v719
    %1044 = vmatpush.bf16.msra.mxu0 %v717
    %1045 = vmatpush.bf16.msra.mxu0 %v715
    %1046 = vmatpush.bf16.msra.mxu0 %v713
    %1047 = vmatpush.bf16.msra.mxu0 %v711
    %1048 = vmatpush.bf16.msra.mxu0 %v709
    %1049 = vmatpush.bf16.msra.mxu0 %v707
    %1050 = vmatpush.bf16.msra.mxu0 %v705
    %1051 = vmatmul.bf16.gmra.mxu0 %v73
    %v1052 = vpop.f32.mrf.mxu0
    %v1053 = vadd.f32 %v1040, %v1052
    %v1054 = vpop.f32.mrf.mxu0
    %1055 = vdwg.mxu0
    %vm1056 = vcmp.gt.f32.partialorder %v949, 0.0
    %vm1057 = vcmp.gt.f32.partialorder %v1053, 0.0
    %v1058 = vmul.f32 %v949, 0.01
    %v1059 = vmul.f32 %v1053, 0.01
    %v1060 = vsel %vm1056, %v949, %v1058
    %v1061 = vsel %vm1057, %v1053, %v1059
    %v1062 = vpack.c.bf16 %v1060, %v1060
    %v1063 = vpack.c.bf16 %v1061, %v1061
    %v1064 = vld [vmem:[#allocation4] sm:$0xf]
    %v1065 = vld [vmem:[#allocation4 + $0x4] sm:$0xf]
    %v1066 = vld [vmem:[#allocation4 + $0x8] sm:$0xf]
    %v1067 = vld [vmem:[#allocation4 + $0xc] sm:$0xf]
    %v1068 = vld [vmem:[#allocation4 + $0x10] sm:$0xf]
    %v1069 = vld [vmem:[#allocation4 + $0x14] sm:$0xf]
    %v1070 = vld [vmem:[#allocation4 + $0x18] sm:$0xf]
    %v1071 = vld [vmem:[#allocation4 + $0x1c] sm:$0xf]
    %v1072 = vld [vmem:[#allocation4 + $0x20] sm:$0xf]
    %v1073 = vld [vmem:[#allocation4 + $0x24] sm:$0xf]
    %v1074 = vld [vmem:[#allocation4 + $0x28] sm:$0xf]
    %v1075 = vld [vmem:[#allocation4 + $0x2c] sm:$0xf]
    %v1076 = vld [vmem:[#allocation4 + $0x30] sm:$0xf]
    %v1077 = vld [vmem:[#allocation4 + $0x34] sm:$0xf]
    %v1078 = vld [vmem:[#allocation4 + $0x38] sm:$0xf]
    %v1079 = vld [vmem:[#allocation4 + $0x3c] sm:$0xf]
    %v1080 = vld [vmem:[#allocation4 + $0x40] sm:$0xf]
    %v1081 = vld [vmem:[#allocation4 + $0x44] sm:$0xf]
    %v1082 = vld [vmem:[#allocation4 + $0x48] sm:$0xf]
    %v1083 = vld [vmem:[#allocation4 + $0x4c] sm:$0xf]
    %v1084 = vld [vmem:[#allocation4 + $0x50] sm:$0xf]
    %v1085 = vld [vmem:[#allocation4 + $0x54] sm:$0xf]
    %v1086 = vld [vmem:[#allocation4 + $0x58] sm:$0xf]
    %v1087 = vld [vmem:[#allocation4 + $0x5c] sm:$0xf]
    %v1088 = vld [vmem:[#allocation4 + $0x60] sm:$0xf]
    %v1089 = vld [vmem:[#allocation4 + $0x64] sm:$0xf]
    %v1090 = vld [vmem:[#allocation4 + $0x68] sm:$0xf]
    %v1091 = vld [vmem:[#allocation4 + $0x6c] sm:$0xf]
    %v1092 = vld [vmem:[#allocation4 + $0x70] sm:$0xf]
    %v1093 = vld [vmem:[#allocation4 + $0x74] sm:$0xf]
    %v1094 = vld [vmem:[#allocation4 + $0x78] sm:$0xf]
    %v1095 = vld [vmem:[#allocation4 + $0x7c] sm:$0xf]
    %v1096 = vld [vmem:[%s4] sm:$0x1]
    %v1098 = vperm.slane %v1096, 0
    %v1132 = vunpack.c.l.b16 %v1064
    %v1133 = vunpack.c.l.b16 %v1065
    %v1134 = vunpack.c.l.b16 %v1066
    %v1135 = vunpack.c.l.b16 %v1067
    %v1136 = vunpack.c.l.b16 %v1068
    %v1137 = vunpack.c.l.b16 %v1069
    %v1138 = vunpack.c.l.b16 %v1070
    %v1139 = vunpack.c.l.b16 %v1071
    %v1140 = vunpack.c.l.b16 %v1072
    %v1141 = vunpack.c.l.b16 %v1073
    %v1142 = vunpack.c.l.b16 %v1074
    %v1143 = vunpack.c.l.b16 %v1075
    %v1144 = vunpack.c.l.b16 %v1076
    %v1145 = vunpack.c.l.b16 %v1077
    %v1146 = vunpack.c.l.b16 %v1078
    %v1147 = vunpack.c.l.b16 %v1079
    %v1148 = vunpack.c.l.b16 %v1080
    %v1149 = vunpack.c.l.b16 %v1081
    %v1150 = vunpack.c.l.b16 %v1082
    %v1151 = vunpack.c.l.b16 %v1083
    %v1152 = vunpack.c.l.b16 %v1084
    %v1153 = vunpack.c.l.b16 %v1085
    %v1154 = vunpack.c.l.b16 %v1086
    %v1155 = vunpack.c.l.b16 %v1087
    %v1156 = vunpack.c.l.b16 %v1088
    %v1157 = vunpack.c.l.b16 %v1089
    %v1158 = vunpack.c.l.b16 %v1090
    %v1159 = vunpack.c.l.b16 %v1091
    %v1160 = vunpack.c.l.b16 %v1092
    %v1161 = vunpack.c.l.b16 %v1093
    %v1162 = vunpack.c.l.b16 %v1094
    %v1163 = vunpack.c.l.b16 %v1095
    %v1164 = vpack.c.b16 %v1133, %v1132
    %v1165 = vpack.c.b16 %v1135, %v1134
    %v1166 = vpack.c.b16 %v1137, %v1136
    %v1167 = vpack.c.b16 %v1139, %v1138
    %v1168 = vpack.c.b16 %v1141, %v1140
    %v1169 = vpack.c.b16 %v1143, %v1142
    %v1170 = vpack.c.b16 %v1145, %v1144
    %v1171 = vpack.c.b16 %v1147, %v1146
    %v1172 = vpack.c.b16 %v1149, %v1148
    %v1173 = vpack.c.b16 %v1151, %v1150
    %v1174 = vpack.c.b16 %v1153, %v1152
    %v1175 = vpack.c.b16 %v1155, %v1154
    %v1176 = vpack.c.b16 %v1157, %v1156
    %v1177 = vpack.c.b16 %v1159, %v1158
    %v1178 = vpack.c.b16 %v1161, %v1160
    %v1179 = vpack.c.b16 %v1163, %v1162
    %1196 = vmatpush.bf16.msra.mxu0 %v1171
    %1197 = vmatpush.bf16.msra.mxu0 %v1170
    %1198 = vmatpush.bf16.msra.mxu0 %v1169
    %1199 = vmatpush.bf16.msra.mxu0 %v1168
    %1200 = vmatpush.bf16.msra.mxu0 %v1167
    %1201 = vmatpush.bf16.msra.mxu0 %v1166
    %1202 = vmatpush.bf16.msra.mxu0 %v1165
    %1203 = vmatpush.bf16.msra.mxu0 %v1164
    %1204 = vmatmul.bf16.gmra.mxu0 %v1062
    %v1205 = vpop.f32.mrf.mxu0
    %v1206 = vadd.f32 %v1098, %v1205
    %v1207 = vpop.f32.mrf.mxu0
    %1208 = vdwg.mxu0
    %1209 = vmatpush.bf16.msra.mxu0 %v1179
    %1210 = vmatpush.bf16.msra.mxu0 %v1178
    %1211 = vmatpush.bf16.msra.mxu0 %v1177
    %1212 = vmatpush.bf16.msra.mxu0 %v1176
    %1213 = vmatpush.bf16.msra.mxu0 %v1175
    %1214 = vmatpush.bf16.msra.mxu0 %v1174
    %1215 = vmatpush.bf16.msra.mxu0 %v1173
    %1216 = vmatpush.bf16.msra.mxu0 %v1172
    %1217 = vmatmul.bf16.gmra.mxu0 %v1063
    %v1218 = vpop.f32.mrf.mxu0
    %v1219 = vadd.f32 %v1206, %v1218
    %v1220 = vpop.f32.mrf.mxu0
    %1221 = vdwg.mxu0
    %vm1222 = vcmp.gt.f32.partialorder %v1219, 0.0
    %v1223 = vmul.f32 %v1219, 0.01
    %v1224 = vsel %vm1222, %v1219, %v1223
    %v1225 = vpack.c.bf16 %v1224, %v1224
    %v1226 = vld [vmem:[%s5] sm:$0xf]
    %v1227 = vld [vmem:[%s5 + $0x4] sm:$0xf]
    %v1228 = vld [vmem:[%s5 + $0x8] sm:$0xf]
    %v1229 = vld [vmem:[%s5 + $0xc] sm:$0xf]
    %v1230 = vld [vmem:[%s5 + $0x10] sm:$0xf]
    %v1231 = vld [vmem:[%s5 + $0x14] sm:$0xf]
    %v1232 = vld [vmem:[%s5 + $0x18] sm:$0xf]
    %v1233 = vld [vmem:[%s5 + $0x1c] sm:$0xf]
    %v1234 = vld [vmem:[%s5 + $0x20] sm:$0xf]
    %v1235 = vld [vmem:[%s5 + $0x24] sm:$0xf]
    %v1236 = vld [vmem:[%s5 + $0x28] sm:$0xf]
    %v1237 = vld [vmem:[%s5 + $0x2c] sm:$0xf]
    %v1238 = vld [vmem:[%s5 + $0x30] sm:$0xf]
    %v1239 = vld [vmem:[%s5 + $0x34] sm:$0xf]
    %v1240 = vld [vmem:[%s5 + $0x38] sm:$0xf]
    %v1241 = vld [vmem:[%s5 + $0x3c] sm:$0xf]
    %v1242 = vld [vmem:[%s6] sm:$0x1]
    %v1244 = vperm.slane %v1242, 0
    %v1262 = vunpack.c.l.b16 %v1226
    %v1263 = vunpack.c.l.b16 %v1227
    %v1264 = vunpack.c.l.b16 %v1228
    %v1265 = vunpack.c.l.b16 %v1229
    %v1266 = vunpack.c.l.b16 %v1230
    %v1267 = vunpack.c.l.b16 %v1231
    %v1268 = vunpack.c.l.b16 %v1232
    %v1269 = vunpack.c.l.b16 %v1233
    %v1270 = vunpack.c.l.b16 %v1234
    %v1271 = vunpack.c.l.b16 %v1235
    %v1272 = vunpack.c.l.b16 %v1236
    %v1273 = vunpack.c.l.b16 %v1237
    %v1274 = vunpack.c.l.b16 %v1238
    %v1275 = vunpack.c.l.b16 %v1239
    %v1276 = vunpack.c.l.b16 %v1240
    %v1277 = vunpack.c.l.b16 %v1241
    %v1278 = vpack.c.b16 %v1263, %v1262
    %v1279 = vpack.c.b16 %v1265, %v1264
    %v1280 = vpack.c.b16 %v1267, %v1266
    %v1281 = vpack.c.b16 %v1269, %v1268
    %v1282 = vpack.c.b16 %v1271, %v1270
    %v1283 = vpack.c.b16 %v1273, %v1272
    %v1284 = vpack.c.b16 %v1275, %v1274
    %v1285 = vpack.c.b16 %v1277, %v1276
    %1294 = vmatpush.bf16.msra.mxu0 %v1285
    %1295 = vmatpush.bf16.msra.mxu0 %v1284
    %1296 = vmatpush.bf16.msra.mxu0 %v1283
    %1297 = vmatpush.bf16.msra.mxu0 %v1282
    %1298 = vmatpush.bf16.msra.mxu0 %v1281
    %1299 = vmatpush.bf16.msra.mxu0 %v1280
    %1300 = vmatpush.bf16.msra.mxu0 %v1279
    %1301 = vmatpush.bf16.msra.mxu0 %v1278
    %1302 = vmatmul.bf16.gmra.mxu0 %v1225
    %v1303 = vpop.f32.mrf.mxu0
    %v1304 = vadd.f32 %v1244, %v1303
    %v1305 = vpop.f32.mrf.mxu0
    %1306 = vdwg.mxu0
    %v1307 = vpack.c.bf16 %v1304, %v1304
    %1308 = vst [vmem:[%s7] sm:$0xf] %v1307
    // Predicated region
    $region38: #{classifier_forward.1} parent=1 // pred_check
      _
    $region39: #{classifier_forward.1} parent=1 // pred_check_branch
      %1310 = sbr.rel (0) target = $region41
    $region40: #{classifier_forward.1} parent=1 // pred_region
      _
    $region41: #{classifier_forward.1} parent=1 // pred_fallthru
      _
    // Predicated region
    $region42: #{classifier_forward.1} parent=1 // pred_check
      _
    $region43: #{classifier_forward.1} parent=1 // pred_check_branch
      %1312 = sbr.rel (0) target = $region45
    $region44: #{classifier_forward.1} parent=1 // pred_region
      _
    $region45: #{classifier_forward.1} parent=1 // pred_fallthru
      _
    %1313 = vsyncpa [#allocation3], 1
    %1314 = vsyncpa [#allocation5], 1

</llo_original>
